<compile_context>
chip_gen: v7x
topology: tpu7x:2x2x1
jax: 0.10.0
libtpu: 0.0.40
codegen_flags: <defaults>
</compile_context>

<pallas_src>
import functools

import jax
import jax.numpy as jnp
from jax import lax
from jax.experimental import pallas as pl
from jax.experimental.pallas import tpu as pltpu


# ---------------------------------------------------------------------------
# Shared MLP (two tiny matmuls) + exact sigmoid + lane-dense store.
# ---------------------------------------------------------------------------
def _mlp_sigmoid_store(avg, mx, w1_ref, b1_ref, w2_ref, b2_ref, scale_ref):
    w1 = w1_ref[...].astype(jnp.float32)      # (hid, C)
    b1 = b1_ref[...].astype(jnp.float32)      # (1, hid)
    w2 = w2_ref[...].astype(jnp.float32)      # (C, hid)
    b2 = b2_ref[...].astype(jnp.float32)      # (1, C)

    def mlp(p):                               # p: (bb, C)
        h = lax.dot_general(p, w1, (((1,), (1,)), ((), ())),
                            preferred_element_type=jnp.float32) + b1
        h = jnp.maximum(h, 0.0)
        return lax.dot_general(h, w2, (((1,), (1,)), ((), ())),
                               preferred_element_type=jnp.float32) + b2

    att = mlp(avg) + mlp(mx)                  # (bb, C)
    # exact sigmoid (runs once per batch block -> cost is negligible)
    scale = 1.0 / (1.0 + jnp.exp(-att))
    scale_ref[...] = scale.reshape(scale_ref.shape).astype(scale_ref.dtype)


# ---------------------------------------------------------------------------
# Fused ChannelGate kernel.
# Grid = (num_batch_blocks, num_HW_tiles); HW is the reduction ("arbitrary")
# axis, accumulated lane-wide into (bb, C, 128) VMEM scratch.  The single
# cross-lane reduce + MLP + sigmoid run at the last HW tile only.
# ---------------------------------------------------------------------------
def _channel_gate_kernel(inv_hw, hw, thw, aligned, masked,
                         x_ref, w1_ref, b1_ref, w2_ref, b2_ref,
                         scale_ref, sum_ref, max_ref):
    if not aligned:
        # Single tile spanning all of HW (thw == HW, not 128-aligned):
        # direct whole-block reduce, scratch unused.
        xb = x_ref[...].astype(jnp.float32)                    # (bb, C, HW)
        avg = jnp.sum(xb, axis=2) * inv_hw                     # (bb, C)
        mx = jnp.max(xb, axis=2)                               # (bb, C)
        _mlp_sigmoid_store(avg, mx, w1_ref, b1_ref, w2_ref, b2_ref, scale_ref)
        return

    t = pl.program_id(1)
    last = pl.num_programs(1) - 1
    n_chunks = thw // 128
    bb, c = x_ref.shape[0], x_ref.shape[1]

    @pl.when(t == 0)
    def _():
        sum_ref[...] = jnp.zeros_like(sum_ref)
        max_ref[...] = jnp.full_like(max_ref, -jnp.inf)

    def accumulate(apply_mask):
        # VALU-only lane-wide partials; no per-tile cross-lane reduce.
        if apply_mask:
            lane = lax.broadcasted_iota(jnp.int32, (bb, c, 128), 2)
            limit0 = hw - t * thw           # number of valid lanes in this tile
        ps = None
        pm = None
        for k in range(n_chunks):
            sl = x_ref[:, :, k * 128:(k + 1) * 128].astype(jnp.float32)
            if apply_mask:
                ok = lane < (limit0 - k * 128)
                sl_s = jnp.where(ok, sl, 0.0)
                sl_m = jnp.where(ok, sl, -jnp.inf)
            else:
                sl_s = sl
                sl_m = sl
            ps = sl_s if ps is None else ps + sl_s
            pm = sl_m if pm is None else jnp.maximum(pm, sl_m)
        sum_ref[...] += ps
        max_ref[...] = jnp.maximum(max_ref[...], pm)

    if masked:
        @pl.when(t < last)
        def _():
            accumulate(False)

        @pl.when(t == last)
        def _():
            accumulate(True)
    else:
        accumulate(False)

    @pl.when(t == last)
    def _():
        # the ONLY cross-lane reductions in the whole kernel
        avg = jnp.sum(sum_ref[...], axis=2) * inv_hw            # (bb, C)
        mx = jnp.max(max_ref[...], axis=2)                      # (bb, C)
        _mlp_sigmoid_store(avg, mx, w1_ref, b1_ref, w2_ref, b2_ref, scale_ref)


def _choose_tiles(B, C, HW, itemsize,
                  budget_bytes=6 * 1024 * 1024, max_chunks=32):
    """Pick (bb, thw, n_t): batch block, lane tile and number of HW tiles.

    budget_bytes ~ per input buffer (safe for v7x's 32 MiB scoped / 64 MiB
    physical VMEM; comfortable on v5e/v6e)."""
    row_bytes = max(1, C * itemsize)
    cap_lanes = min(max(128, budget_bytes // row_bytes), max_chunks * 128)
    if HW <= cap_lanes:
        thw = HW                          # one tile spans all of HW
    else:
        thw = (cap_lanes // 128) * 128    # 128-aligned tile; last tile masked
    n_t = pl.cdiv(HW, thw)
    bb = 1
    for cand in range(B, 0, -1):          # largest divisor of B within budget
        if B % cand == 0 and cand * C * (thw * itemsize + 1024) <= budget_bytes:
            bb = cand
            break
    return bb, thw, n_t


def channel_gate_forward(x, params):
    """ChannelGate.forward: returns sigmoid channel-attention scale (B,C,1,1)."""
    B, C, H, W = x.shape
    HW = H * W
    hid = params["w1"].shape[0]

    x_flat = x.reshape(B, C, HW)                  # native dtype, HW on lanes
    bb, thw, n_t = _choose_tiles(B, C, HW, x.dtype.itemsize)
    aligned = (thw % 128 == 0)
    masked = aligned and (HW % thw != 0)

    kernel = functools.partial(_channel_gate_kernel,
                               1.0 / float(HW), HW, thw, aligned, masked)

    vmem_limit = int(min(32 * 1024 * 1024,
                         max(16 * 1024 * 1024,
                             2 * bb * C * (thw * x.dtype.itemsize + 1024)
                             + 4 * 1024 * 1024)))

    scale = pl.pallas_call(
        kernel,
        out_shape=jax.ShapeDtypeStruct((B, 1, C), x.dtype),
        grid=(B // bb, n_t),
        in_specs=[
            pl.BlockSpec((bb, C, thw), lambda b, t: (b, 0, t)),
            pl.BlockSpec((hid, C), lambda b, t: (0, 0)),
            pl.BlockSpec((1, hid), lambda b, t: (0, 0)),
            pl.BlockSpec((C, hid), lambda b, t: (0, 0)),
            pl.BlockSpec((1, C), lambda b, t: (0, 0)),
        ],
        out_specs=pl.BlockSpec((bb, 1, C), lambda b, t: (b, 0, 0)),
        scratch_shapes=[pltpu.VMEM((bb, C, 128), jnp.float32),   # running sum
                        pltpu.VMEM((bb, C, 128), jnp.float32)],  # running max
        compiler_params=pltpu.CompilerParams(
            dimension_semantics=("parallel", "arbitrary"),
            vmem_limit_bytes=vmem_limit),
    )(x_flat, params["w1"], params["b1"], params["w2"], params["b2"])

    return scale.reshape(B, C, 1, 1)


def init_params(key, C, reduction=16):
    hid = max(1, C // reduction)
    k1, k2, k3, k4 = jax.random.split(key, 4)
    # nn.Linear weights stored PyTorch-style (out, in); biases as row vectors
    w1 = jax.random.normal(k1, (hid, C), jnp.float32) * (1.0 / jnp.sqrt(C))
    b1 = jax.random.normal(k2, (1, hid), jnp.float32) * 0.05
    w2 = jax.random.normal(k3, (C, hid), jnp.float32) * (1.0 / jnp.sqrt(hid))
    b2 = jax.random.normal(k4, (1, C), jnp.float32) * 0.05
    return dict(w1=w1, b1=b1, w2=w2, b2=b2)


def channel_gate_reference(x, params):
    """Pure-JAX reference of ChannelGate.forward (pool_types=['avg','max'])."""
    w1, b1, w2, b2 = params["w1"], params["b1"], params["w2"], params["b2"]

    def mlp(p):  # p: (B, C)
        h = jnp.maximum(
            jnp.dot(p, w1.T, precision=lax.Precision.HIGHEST) + b1, 0.0)
        return jnp.dot(h, w2.T, precision=lax.Precision.HIGHEST) + b2

    avg = x.mean(axis=(2, 3))
    mx = x.max(axis=(2, 3))
    att = mlp(avg) + mlp(mx)
    return jax.nn.sigmoid(att)[:, :, None, None]


if __name__ == "__main__":
    key = jax.random.PRNGKey(0)

    def run_case(i, B, C, H, W, reduction=16):
        kx, kp = jax.random.split(jax.random.fold_in(key, i))
        x = jax.random.normal(kx, (B, C, H, W), jnp.float32)
        params = init_params(kp, C, reduction=reduction)
        y = jax.block_until_ready(channel_gate_forward(x, params))
        y_ref = channel_gate_reference(x, params)
        assert y.shape == (B, C, 1, 1)
        err = jnp.max(jnp.abs(y - y_ref))
        assert jnp.allclose(y, y_ref, atol=2e-3, rtol=2e-3), \
            f"case {i}: max abs err {err}"

    # gate_channels=32, reduction_ratio=16 (default CBAM config), HW aligned
    run_case(0, 2, 32, 16, 16)
    # masked multi-tile reduction path: HW = 72*72 = 5184 (not tile-divisible)
    run_case(1, 1, 64, 72, 72)
    # non-128-aligned single-tile path: HW = 10*10 = 100
    run_case(2, 2, 32, 10, 10)

    print("KERNEL_OK")
</pallas_src>

<mosaic_0001>
module attributes {stable_mosaic.version = 11 : i64} {
  func.func @_channel_gate_kernel(%arg0: i32, %arg1: i32, %arg2: memref<2x32x256xf32, #tpu.memory_space<vmem>>, %arg3: memref<2x32xf32, #tpu.memory_space<vmem>>, %arg4: memref<1x2xf32, #tpu.memory_space<vmem>>, %arg5: memref<32x2xf32, #tpu.memory_space<vmem>>, %arg6: memref<1x32xf32, #tpu.memory_space<vmem>>, %arg7: memref<2x1x32xf32, #tpu.memory_space<vmem>>, %arg8: memref<2x32x128xf32, #tpu.memory_space<vmem>>, %arg9: memref<2x32x128xf32, #tpu.memory_space<vmem>>) attributes {dimension_semantics = [#tpu.dimension_semantics<parallel>, #tpu.dimension_semantics<arbitrary>], iteration_bounds = array<i64: 1, 1>, scalar_prefetch = 0 : i64, scratch_operands = 2 : i64, tpu.core_type = #tpu.core_type<tc>, window_params = [{transform_indices = @transform_0, window_bounds = array<i64: 2, 32, 256>}, {pipeline_mode = #tpu.pipeline_mode<synchronous>, transform_indices = @transform_1, window_bounds = array<i64: 2, 32>}, {pipeline_mode = #tpu.pipeline_mode<synchronous>, transform_indices = @transform_2, window_bounds = array<i64: 1, 2>}, {pipeline_mode = #tpu.pipeline_mode<synchronous>, transform_indices = @transform_3, window_bounds = array<i64: 32, 2>}, {pipeline_mode = #tpu.pipeline_mode<synchronous>, transform_indices = @transform_4, window_bounds = array<i64: 1, 32>}, {transform_indices = @transform_5, window_bounds = array<i64: 2, 1, 32>}]} {
    %c0_i32 = arith.constant 0 : i32
    %0 = arith.cmpi eq, %arg1, %c0_i32 : i32
    %1 = arith.extui %0 : i1 to i32
    %c0_i32_0 = arith.constant 0 : i32
    %2 = arith.cmpi ne, %1, %c0_i32_0 : i32
    scf.if %2 {
      %cst = arith.constant 0.000000e+00 : f32
      %16 = vector.broadcast %cst : f32 to vector<2x32x128xf32>
      %c0_19 = arith.constant 0 : index
      %c0_20 = arith.constant 0 : index
      %c0_21 = arith.constant 0 : index
      %17 = vector.load %arg8[%c0_19, %c0_20, %c0_21] : memref<2x32x128xf32, #tpu.memory_space<vmem>>, vector<2x32x128xf32>
      tpu.vector_store %arg8[%c0_19, %c0_20, %c0_21], %16 {strides = array<i32>} : memref<2x32x128xf32, #tpu.memory_space<vmem>>, vector<2x32x128xf32>,
      %cst_22 = arith.constant 0xFF800000 : f32
      %18 = vector.broadcast %cst_22 : f32 to vector<2x32x128xf32>
      %c0_23 = arith.constant 0 : index
      %c0_24 = arith.constant 0 : index
      %c0_25 = arith.constant 0 : index
      %19 = vector.load %arg9[%c0_23, %c0_24, %c0_25] : memref<2x32x128xf32, #tpu.memory_space<vmem>>, vector<2x32x128xf32>
      tpu.vector_store %arg9[%c0_23, %c0_24, %c0_25], %18 {strides = array<i32>} : memref<2x32x128xf32, #tpu.memory_space<vmem>>, vector<2x32x128xf32>,
    } else {
    }
    %c0 = arith.constant 0 : index
    %c0_1 = arith.constant 0 : index
    %c0_2 = arith.constant 0 : index
    %3 = vector.load %arg2[%c0, %c0_1, %c0_2] : memref<2x32x256xf32, #tpu.memory_space<vmem>>, vector<2x32x128xf32>
    %c0_3 = arith.constant 0 : index
    %c0_4 = arith.constant 0 : index
    %c128 = arith.constant 128 : index
    %4 = vector.load %arg2[%c0_3, %c0_4, %c128] : memref<2x32x256xf32, #tpu.memory_space<vmem>>, vector<2x32x128xf32>
    %5 = arith.addf %3, %4 : vector<2x32x128xf32>
    %6 = arith.maximumf %3, %4 : vector<2x32x128xf32>
    %c0_5 = arith.constant 0 : index
    %c0_6 = arith.constant 0 : index
    %c0_7 = arith.constant 0 : index
    %7 = vector.load %arg8[%c0_5, %c0_6, %c0_7] : memref<2x32x128xf32, #tpu.memory_space<vmem>>, vector<2x32x128xf32>
    %8 = arith.addf %7, %5 : vector<2x32x128xf32>
    %c0_8 = arith.constant 0 : index
    %c0_9 = arith.constant 0 : index
    %c0_10 = arith.constant 0 : index
    %9 = vector.load %arg8[%c0_8, %c0_9, %c0_10] : memref<2x32x128xf32, #tpu.memory_space<vmem>>, vector<2x32x128xf32>
    tpu.vector_store %arg8[%c0_8, %c0_9, %c0_10], %8 {strides = array<i32>} : memref<2x32x128xf32, #tpu.memory_space<vmem>>, vector<2x32x128xf32>,
    %c0_11 = arith.constant 0 : index
    %c0_12 = arith.constant 0 : index
    %c0_13 = arith.constant 0 : index
    %10 = vector.load %arg9[%c0_11, %c0_12, %c0_13] : memref<2x32x128xf32, #tpu.memory_space<vmem>>, vector<2x32x128xf32>
    %11 = arith.maximumf %10, %6 : vector<2x32x128xf32>
    %c0_14 = arith.constant 0 : index
    %c0_15 = arith.constant 0 : index
    %c0_16 = arith.constant 0 : index
    %12 = vector.load %arg9[%c0_14, %c0_15, %c0_16] : memref<2x32x128xf32, #tpu.memory_space<vmem>>, vector<2x32x128xf32>
    tpu.vector_store %arg9[%c0_14, %c0_15, %c0_16], %11 {strides = array<i32>} : memref<2x32x128xf32, #tpu.memory_space<vmem>>, vector<2x32x128xf32>,
    %c0_i32_17 = arith.constant 0 : i32
    %13 = arith.cmpi eq, %arg1, %c0_i32_17 : i32
    %14 = arith.extui %13 : i1 to i32
    %c0_i32_18 = arith.constant 0 : i32
    %15 = arith.cmpi ne, %14, %c0_i32_18 : i32
    scf.if %15 {
      %c0_19 = arith.constant 0 : index
      %c0_20 = arith.constant 0 : index
      %c0_21 = arith.constant 0 : index
      %16 = vector.load %arg8[%c0_19, %c0_20, %c0_21] : memref<2x32x128xf32, #tpu.memory_space<vmem>>, vector<2x32x128xf32>
      %cst = arith.constant dense<0.000000e+00> : vector<2x32xf32>
      %17 = vector.multi_reduction <add>, %16, %cst [2] : vector<2x32x128xf32> to vector<2x32xf32>
      %cst_22 = arith.constant 3.906250e-03 : f32
      %18 = vector.broadcast %cst_22 : f32 to vector<2x32xf32>
      %19 = arith.mulf %17, %18 : vector<2x32xf32>
      %c0_23 = arith.constant 0 : index
      %c0_24 = arith.constant 0 : index
      %c0_25 = arith.constant 0 : index
      %20 = vector.load %arg9[%c0_23, %c0_24, %c0_25] : memref<2x32x128xf32, #tpu.memory_space<vmem>>, vector<2x32x128xf32>
      %cst_26 = arith.constant dense<0xFF800000> : vector<2x32xf32>
      %21 = vector.multi_reduction <maximumf>, %20, %cst_26 [2] : vector<2x32x128xf32> to vector<2x32xf32>
      %c0_27 = arith.constant 0 : index
      %c0_28 = arith.constant 0 : index
      %22 = vector.load %arg3[%c0_27, %c0_28] : memref<2x32xf32, #tpu.memory_space<vmem>>, vector<2x32xf32>
      %c0_29 = arith.constant 0 : index
      %c0_30 = arith.constant 0 : index
      %23 = vector.load %arg4[%c0_29, %c0_30] : memref<1x2xf32, #tpu.memory_space<vmem>>, vector<1x2xf32>
      %c0_31 = arith.constant 0 : index
      %c0_32 = arith.constant 0 : index
      %24 = vector.load %arg5[%c0_31, %c0_32] : memref<32x2xf32, #tpu.memory_space<vmem>>, vector<32x2xf32>
      %c0_33 = arith.constant 0 : index
      %c0_34 = arith.constant 0 : index
      %25 = vector.load %arg6[%c0_33, %c0_34] : memref<1x32xf32, #tpu.memory_space<vmem>>, vector<1x32xf32>
      %cst_35 = arith.constant dense<0.000000e+00> : vector<2x2xf32>
      %26 = tpu.matmul %19, %22, %cst_35 {dimension_numbers = #tpu.dot_dimension_numbers<[1], [1], [0], [0], [0, 0, 1, 0], [], []>} : vector<2x32xf32>, vector<2x32xf32>, vector<2x2xf32> -> vector<2x2xf32>
      %27 = vector.broadcast %23 : vector<1x2xf32> to vector<2x2xf32>
      %28 = arith.addf %26, %27 : vector<2x2xf32>
      %cst_36 = arith.constant 0.000000e+00 : f32
      %29 = vector.broadcast %cst_36 : f32 to vector<2x2xf32>
      %30 = arith.maximumf %28, %29 : vector<2x2xf32>
      %cst_37 = arith.constant dense<0.000000e+00> : vector<2x32xf32>
      %31 = tpu.matmul %30, %24, %cst_37 {dimension_numbers = #tpu.dot_dimension_numbers<[1], [1], [0], [0], [0, 0, 1, 0], [], []>} : vector<2x2xf32>, vector<32x2xf32>, vector<2x32xf32> -> vector<2x32xf32>
      %32 = vector.broadcast %25 : vector<1x32xf32> to vector<2x32xf32>
      %33 = arith.addf %31, %32 : vector<2x32xf32>
      %cst_38 = arith.constant dense<0.000000e+00> : vector<2x2xf32>
      %34 = tpu.matmul %21, %22, %cst_38 {dimension_numbers = #tpu.dot_dimension_numbers<[1], [1], [0], [0], [0, 0, 1, 0], [], []>} : vector<2x32xf32>, vector<2x32xf32>, vector<2x2xf32> -> vector<2x2xf32>
      %35 = vector.broadcast %23 : vector<1x2xf32> to vector<2x2xf32>
      %36 = arith.addf %34, %35 : vector<2x2xf32>
      %cst_39 = arith.constant 0.000000e+00 : f32
      %37 = vector.broadcast %cst_39 : f32 to vector<2x2xf32>
      %38 = arith.maximumf %36, %37 : vector<2x2xf32>
      %cst_40 = arith.constant dense<0.000000e+00> : vector<2x32xf32>
      %39 = tpu.matmul %38, %24, %cst_40 {dimension_numbers = #tpu.dot_dimension_numbers<[1], [1], [0], [0], [0, 0, 1, 0], [], []>} : vector<2x2xf32>, vector<32x2xf32>, vector<2x32xf32> -> vector<2x32xf32>
      %40 = vector.broadcast %25 : vector<1x32xf32> to vector<2x32xf32>
      %41 = arith.addf %39, %40 : vector<2x32xf32>
      %42 = arith.addf %33, %41 : vector<2x32xf32>
      %cst_41 = arith.constant 0.000000e+00 : f32
      %43 = vector.broadcast %cst_41 : f32 to vector<2x32xf32>
      %44 = arith.subf %43, %42 : vector<2x32xf32>
      %45 = math.exp %44 : vector<2x32xf32>
      %cst_42 = arith.constant 1.000000e+00 : f32
      %46 = vector.broadcast %cst_42 : f32 to vector<2x32xf32>
      %47 = arith.addf %46, %45 : vector<2x32xf32>
      %cst_43 = arith.constant 1.000000e+00 : f32
      %48 = vector.broadcast %cst_43 : f32 to vector<2x32xf32>
      %49 = arith.divf %48, %47 : vector<2x32xf32>
      %50 = vector.shape_cast %49 : vector<2x32xf32> to vector<2x1x32xf32>
      %c0_44 = arith.constant 0 : index
      %c0_45 = arith.constant 0 : index
      %c0_46 = arith.constant 0 : index
      %51 = vector.load %arg7[%c0_44, %c0_45, %c0_46] : memref<2x1x32xf32, #tpu.memory_space<vmem>>, vector<2x1x32xf32>
      tpu.vector_store %arg7[%c0_44, %c0_45, %c0_46], %50 {strides = array<i32>} : memref<2x1x32xf32, #tpu.memory_space<vmem>>, vector<2x1x32xf32>,
    } else {
    }
    return
  }
  func.func @transform_0(%arg0: i32, %arg1: i32) -> (i32, i32, i32) {
    %c0_i32 = arith.constant 0 : i32
    %c0_i32_0 = arith.constant 0 : i32
    return %arg0, %c0_i32, %arg1 : i32, i32, i32
  }
  func.func @transform_1(%arg0: i32, %arg1: i32) -> (i32, i32) {
    %c0_i32 = arith.constant 0 : i32
    %c0_i32_0 = arith.constant 0 : i32
    %c0_i32_1 = arith.constant 0 : i32
    return %c0_i32, %c0_i32_0 : i32, i32
  }
  func.func @transform_2(%arg0: i32, %arg1: i32) -> (i32, i32) {
    %c0_i32 = arith.constant 0 : i32
    %c0_i32_0 = arith.constant 0 : i32
    %c0_i32_1 = arith.constant 0 : i32
    return %c0_i32, %c0_i32_0 : i32, i32
  }
  func.func @transform_3(%arg0: i32, %arg1: i32) -> (i32, i32) {
    %c0_i32 = arith.constant 0 : i32
    %c0_i32_0 = arith.constant 0 : i32
    %c0_i32_1 = arith.constant 0 : i32
    return %c0_i32, %c0_i32_0 : i32, i32
  }
  func.func @transform_4(%arg0: i32, %arg1: i32) -> (i32, i32) {
    %c0_i32 = arith.constant 0 : i32
    %c0_i32_0 = arith.constant 0 : i32
    %c0_i32_1 = arith.constant 0 : i32
    return %c0_i32, %c0_i32_0 : i32, i32
  }
  func.func @transform_5(%arg0: i32, %arg1: i32) -> (i32, i32, i32) {
    %c0_i32 = arith.constant 0 : i32
    %c0_i32_0 = arith.constant 0 : i32
    %c0_i32_1 = arith.constant 0 : i32
    return %arg0, %c0_i32, %c0_i32_0 : i32, i32, i32
  }
}

</mosaic_0001>

<llo_original>
// kernel: tpu_custom_call.1
$region0: #{tpu_custom_call.1}
  #allocation0 [shape = 'u32[]', space=smem, size = 0x4, offset = 0x4, fixed_abs, tag = 'smem constant byte address 0x4 - core index']
  #allocation1 [shape = 'u32[144,128]{1,0:T(1,128)}', space=vmem, size = 0x12000, scoped, tag = 'internal scratch']
  #allocation2 [shape = 'f32[2,32,128]{2,1,0:T(8,128)}', space=vmem, size = 0x8000, scoped, tag = 'scratch operand']
  #allocation3 [shape = 'f32[2,32,128]{2,1,0:T(8,128)}', space=vmem, size = 0x8000, scoped, tag = 'scratch operand']
  %s0 = inlined_call_operand.hbm [shape: f32[2,32,256], index: 0, kind: input, shape index: {}]
  %s1 = inlined_call_operand.vmem [shape: f32[2,32], index: 1, kind: input, shape index: {}]
  %s2 = inlined_call_operand.vmem [shape: f32[1,2], index: 2, kind: input, shape index: {}]
  %s3 = inlined_call_operand.vmem [shape: f32[32,2], index: 3, kind: input, shape index: {}]
  %s4 = inlined_call_operand.vmem [shape: f32[1,32], index: 4, kind: input, shape index: {}]
  %s5 = inlined_call_operand.hbm [shape: f32[2,1,32], index: 5, kind: output, shape index: {}]
  %s6 = sld [smem:[#allocation0]]
  $region42: #{tpu_custom_call.1} parent=0
    _
  %s8 = ssub.s32 1, %s6
  %s9 = scalar_select 0, %s8, %s6
  $region1: #{tpu_custom_call.1} parent=0
    #allocation4 [shape = 'u8[65536]{0}', space=vmem, size = 0x10000, scoped, tag = 'input window, operand 0, single buffered']
    #allocation5 [shape = 's32[1]{0}', space=sflag, size = 0x4, scoped, tag = 'scoped memory for tpu_custom_call.1']
    #allocation6 [shape = 's32[1]{0}', space=sflag, size = 0x4, scoped, tag = 'scoped memory for tpu_custom_call.1']
    #allocation7 [shape = 'u8[1024]{0}', space=vmem, size = 0x400, scoped, tag = 'output window, operand 0, single buffered']
    %10 = vsyncpa [#allocation5], 0
    %11 = vsyncpa [#allocation6], 0
    // Predicated region
    $region2: #{tpu_custom_call.1} parent=1 // pred_check
      _
    $region3: #{tpu_custom_call.1} parent=1 // pred_check_branch
      %13 = sbr.rel (0) target = $region5
    $region4: #{tpu_custom_call.1} parent=1 // pred_region
      %s15 = ssub.s32 2048, 2048
      %16 = vsyncadd [#allocation5], %s15
      %s17 = sshll.u32 [#allocation4], 4
      %s18 = int_to_ptr.vmem [resolvable:$true] %s17
      %23 = dma.hbm_to_vmem [thread:$0]  %s0, 2048, %s18, [#allocation5], 256, 256, 16
    $region5: #{tpu_custom_call.1} parent=1 // pred_fallthru
      _
    // Predicated region
    $region6: #{tpu_custom_call.1} parent=1 // pred_check
      _
    $region7: #{tpu_custom_call.1} parent=1 // pred_check_branch
      %25 = sbr.rel (0) target = $region9
    $region8: #{tpu_custom_call.1} parent=1 // pred_region
      _
    $region9: #{tpu_custom_call.1} parent=1 // pred_fallthru
      _
    // Predicated region
    $region10: #{tpu_custom_call.1} parent=1 // pred_check
      _
    $region11: #{tpu_custom_call.1} parent=1 // pred_check_branch
      %27 = sbr.rel (0) target = $region13
    $region12: #{tpu_custom_call.1} parent=1 // pred_region
      _
    $region13: #{tpu_custom_call.1} parent=1 // pred_fallthru
      _
    // Predicated region
    $region14: #{tpu_custom_call.1} parent=1 // pred_check
      _
    $region15: #{tpu_custom_call.1} parent=1 // pred_check_branch
      %29 = sbr.rel (0) target = $region17
    $region16: #{tpu_custom_call.1} parent=1 // pred_region
      _
    $region17: #{tpu_custom_call.1} parent=1 // pred_fallthru
      _
    // Predicated region
    $region18: #{tpu_custom_call.1} parent=1 // pred_check
      _
    $region19: #{tpu_custom_call.1} parent=1 // pred_check_branch
      %31 = sbr.rel (0) target = $region21
    $region20: #{tpu_custom_call.1} parent=1 // pred_region
      _
    $region21: #{tpu_custom_call.1} parent=1 // pred_fallthru
      _
    // Predicated region
    $region22: #{tpu_custom_call.1} parent=1 // pred_check
      _
    $region23: #{tpu_custom_call.1} parent=1 // pred_check_branch
      %33 = sbr.rel (0) target = $region25
    $region24: #{tpu_custom_call.1} parent=1 // pred_region
      %34 = dma.done [#allocation5], 2048
    $region25: #{tpu_custom_call.1} parent=1 // pred_fallthru
      _
    %p35 = scmp.eq.s32.totalorder 0, 0
    // Predicated region
    $region26: #{tpu_custom_call.1} parent=1 // pred_check
      %p36 = pneg %p35
    $region27: #{tpu_custom_call.1} parent=1 // pred_check_branch
      %38 = sbr.rel (%p36) target = $region29
    $region28: #{tpu_custom_call.1} parent=1 // pred_region
      %39 = vst [vmem:[#allocation2] sm:$0xff] 0.0
      %40 = vst [vmem:[#allocation2 + $0x8] sm:$0xff] 0.0
      %41 = vst [vmem:[#allocation2 + $0x10] sm:$0xff] 0.0
      %42 = vst [vmem:[#allocation2 + $0x18] sm:$0xff] 0.0
      %43 = vst [vmem:[#allocation2 + $0x20] sm:$0xff] 0.0
      %44 = vst [vmem:[#allocation2 + $0x28] sm:$0xff] 0.0
      %45 = vst [vmem:[#allocation2 + $0x30] sm:$0xff] 0.0
      %46 = vst [vmem:[#allocation2 + $0x38] sm:$0xff] 0.0
      %47 = vst [vmem:[#allocation3] sm:$0xff] -inf
      %48 = vst [vmem:[#allocation3 + $0x8] sm:$0xff] -inf
      %49 = vst [vmem:[#allocation3 + $0x10] sm:$0xff] -inf
      %50 = vst [vmem:[#allocation3 + $0x18] sm:$0xff] -inf
      %51 = vst [vmem:[#allocation3 + $0x20] sm:$0xff] -inf
      %52 = vst [vmem:[#allocation3 + $0x28] sm:$0xff] -inf
      %53 = vst [vmem:[#allocation3 + $0x30] sm:$0xff] -inf
      %54 = vst [vmem:[#allocation3 + $0x38] sm:$0xff] -inf
    $region29: #{tpu_custom_call.1} parent=1 // pred_fallthru
      _
    %v55 = vld [vmem:[#allocation4] sm:$0xff]
    %v56 = vld [vmem:[#allocation4 + $0x10] sm:$0xff]
    %v57 = vld [vmem:[#allocation4 + $0x20] sm:$0xff]
    %v58 = vld [vmem:[#allocation4 + $0x30] sm:$0xff]
    %v59 = vld [vmem:[#allocation4 + $0x40] sm:$0xff]
    %v60 = vld [vmem:[#allocation4 + $0x50] sm:$0xff]
    %v61 = vld [vmem:[#allocation4 + $0x60] sm:$0xff]
    %v62 = vld [vmem:[#allocation4 + $0x70] sm:$0xff]
    %v63 = vld [vmem:[#allocation4 + $0x8] sm:$0xff]
    %v64 = vld [vmem:[#allocation4 + $0x18] sm:$0xff]
    %v65 = vld [vmem:[#allocation4 + $0x28] sm:$0xff]
    %v66 = vld [vmem:[#allocation4 + $0x38] sm:$0xff]
    %v67 = vld [vmem:[#allocation4 + $0x48] sm:$0xff]
    %v68 = vld [vmem:[#allocation4 + $0x58] sm:$0xff]
    %v69 = vld [vmem:[#allocation4 + $0x68] sm:$0xff]
    %v70 = vld [vmem:[#allocation4 + $0x78] sm:$0xff]
    %v71 = vadd.f32 %v55, %v63
    %v72 = vadd.f32 %v56, %v64
    %v73 = vadd.f32 %v57, %v65
    %v74 = vadd.f32 %v58, %v66
    %v75 = vadd.f32 %v59, %v67
    %v76 = vadd.f32 %v60, %v68
    %v77 = vadd.f32 %v61, %v69
    %v78 = vadd.f32 %v62, %v70
    %v79 = vmax.f32 %v55, %v63
    %v80 = vmax.f32 %v56, %v64
    %v81 = vmax.f32 %v57, %v65
    %v82 = vmax.f32 %v58, %v66
    %v83 = vmax.f32 %v59, %v67
    %v84 = vmax.f32 %v60, %v68
    %v85 = vmax.f32 %v61, %v69
    %v86 = vmax.f32 %v62, %v70
    %v87 = vld [vmem:[#allocation2] sm:$0xff]
    %v88 = vld [vmem:[#allocation2 + $0x8] sm:$0xff]
    %v89 = vld [vmem:[#allocation2 + $0x10] sm:$0xff]
    %v90 = vld [vmem:[#allocation2 + $0x18] sm:$0xff]
    %v91 = vld [vmem:[#allocation2 + $0x20] sm:$0xff]
    %v92 = vld [vmem:[#allocation2 + $0x28] sm:$0xff]
    %v93 = vld [vmem:[#allocation2 + $0x30] sm:$0xff]
    %v94 = vld [vmem:[#allocation2 + $0x38] sm:$0xff]
    %v95 = vadd.f32 %v87, %v71
    %v96 = vadd.f32 %v88, %v72
    %v97 = vadd.f32 %v89, %v73
    %v98 = vadd.f32 %v90, %v74
    %v99 = vadd.f32 %v91, %v75
    %v100 = vadd.f32 %v92, %v76
    %v101 = vadd.f32 %v93, %v77
    %v102 = vadd.f32 %v94, %v78
    %103 = vst [vmem:[#allocation2] sm:$0xff] %v95
    %104 = vst [vmem:[#allocation2 + $0x8] sm:$0xff] %v96
    %105 = vst [vmem:[#allocation2 + $0x10] sm:$0xff] %v97
    %106 = vst [vmem:[#allocation2 + $0x18] sm:$0xff] %v98
    %107 = vst [vmem:[#allocation2 + $0x20] sm:$0xff] %v99
    %108 = vst [vmem:[#allocation2 + $0x28] sm:$0xff] %v100
    %109 = vst [vmem:[#allocation2 + $0x30] sm:$0xff] %v101
    %110 = vst [vmem:[#allocation2 + $0x38] sm:$0xff] %v102
    %v111 = vld [vmem:[#allocation3] sm:$0xff]
    %v112 = vld [vmem:[#allocation3 + $0x8] sm:$0xff]
    %v113 = vld [vmem:[#allocation3 + $0x10] sm:$0xff]
    %v114 = vld [vmem:[#allocation3 + $0x18] sm:$0xff]
    %v115 = vld [vmem:[#allocation3 + $0x20] sm:$0xff]
    %v116 = vld [vmem:[#allocation3 + $0x28] sm:$0xff]
    %v117 = vld [vmem:[#allocation3 + $0x30] sm:$0xff]
    %v118 = vld [vmem:[#allocation3 + $0x38] sm:$0xff]
    %v119 = vmax.f32 %v111, %v79
    %v120 = vmax.f32 %v112, %v80
    %v121 = vmax.f32 %v113, %v81
    %v122 = vmax.f32 %v114, %v82
    %v123 = vmax.f32 %v115, %v83
    %v124 = vmax.f32 %v116, %v84
    %v125 = vmax.f32 %v117, %v85
    %v126 = vmax.f32 %v118, %v86
    %127 = vst [vmem:[#allocation3] sm:$0xff] %v119
    %128 = vst [vmem:[#allocation3 + $0x8] sm:$0xff] %v120
    %129 = vst [vmem:[#allocation3 + $0x10] sm:$0xff] %v121
    %130 = vst [vmem:[#allocation3 + $0x18] sm:$0xff] %v122
    %131 = vst [vmem:[#allocation3 + $0x20] sm:$0xff] %v123
    %132 = vst [vmem:[#allocation3 + $0x28] sm:$0xff] %v124
    %133 = vst [vmem:[#allocation3 + $0x30] sm:$0xff] %v125
    %134 = vst [vmem:[#allocation3 + $0x38] sm:$0xff] %v126
    // Predicated region
    $region30: #{tpu_custom_call.1} parent=1 // pred_check
      %p135 = pneg %p35
    $region31: #{tpu_custom_call.1} parent=1 // pred_check_branch
      %137 = sbr.rel (%p135) target = $region33
    $region32: #{tpu_custom_call.1} parent=1 // pred_region
      %v138 = vld [vmem:[#allocation2] sm:$0xff]
      %v139 = vld [vmem:[#allocation2 + $0x8] sm:$0xff]
      %v140 = vld [vmem:[#allocation2 + $0x10] sm:$0xff]
      %v141 = vld [vmem:[#allocation2 + $0x18] sm:$0xff]
      %v142 = vld [vmem:[#allocation2 + $0x20] sm:$0xff]
      %v143 = vld [vmem:[#allocation2 + $0x28] sm:$0xff]
      %v144 = vld [vmem:[#allocation2 + $0x30] sm:$0xff]
      %v145 = vld [vmem:[#allocation2 + $0x38] sm:$0xff]
      %146 = vadd.xlane.f32.xlu0 %v138
      %v147 = vpop.xlane.xlu0 %146
      %148 = vadd.xlane.f32.xlu0 %v139
      %v149 = vpop.xlane.xlu0 %148
      %150 = vadd.xlane.f32.xlu0 %v140
      %v151 = vpop.xlane.xlu0 %150
      %152 = vadd.xlane.f32.xlu0 %v141
      %v153 = vpop.xlane.xlu0 %152
      %154 = vadd.xlane.f32.xlu0 %v142
      %v155 = vpop.xlane.xlu0 %154
      %156 = vadd.xlane.f32.xlu0 %v143
      %v157 = vpop.xlane.xlu0 %156
      %158 = vadd.xlane.f32.xlu0 %v144
      %v159 = vpop.xlane.xlu0 %158
      %160 = vadd.xlane.f32.xlu0 %v145
      %v161 = vpop.xlane.xlu0 %160
      %v162 = vmul.f32 %v147, 0.00390625
      %v163 = vmul.f32 %v149, 0.00390625
      %v164 = vmul.f32 %v151, 0.00390625
      %v165 = vmul.f32 %v153, 0.00390625
      %v166 = vmul.f32 %v155, 0.00390625
      %v167 = vmul.f32 %v157, 0.00390625
      %v168 = vmul.f32 %v159, 0.00390625
      %v169 = vmul.f32 %v161, 0.00390625
      %v170 = vld [vmem:[#allocation3] sm:$0xff]
      %v171 = vld [vmem:[#allocation3 + $0x8] sm:$0xff]
      %v172 = vld [vmem:[#allocation3 + $0x10] sm:$0xff]
      %v173 = vld [vmem:[#allocation3 + $0x18] sm:$0xff]
      %v174 = vld [vmem:[#allocation3 + $0x20] sm:$0xff]
      %v175 = vld [vmem:[#allocation3 + $0x28] sm:$0xff]
      %v176 = vld [vmem:[#allocation3 + $0x30] sm:$0xff]
      %v177 = vld [vmem:[#allocation3 + $0x38] sm:$0xff]
      %178 = vmax.xlane.f32.xlu0 %v170
      %v179 = vpop.xlane.xlu0 %178
      %180 = vmax.xlane.f32.xlu0 %v171
      %v181 = vpop.xlane.xlu0 %180
      %182 = vmax.xlane.f32.xlu0 %v172
      %v183 = vpop.xlane.xlu0 %182
      %184 = vmax.xlane.f32.xlu0 %v173
      %v185 = vpop.xlane.xlu0 %184
      %186 = vmax.xlane.f32.xlu0 %v174
      %v187 = vpop.xlane.xlu0 %186
      %188 = vmax.xlane.f32.xlu0 %v175
      %v189 = vpop.xlane.xlu0 %188
      %190 = vmax.xlane.f32.xlu0 %v176
      %v191 = vpop.xlane.xlu0 %190
      %192 = vmax.xlane.f32.xlu0 %v177
      %v193 = vpop.xlane.xlu0 %192
      %v194 = vld [vmem:[%s1] sm:$0x3]
      %v195 = vld [vmem:[%s2] sm:$0x1]
      %v196 = vld [vmem:[%s3] sm:$0xff]
      %v197 = vld [vmem:[%s3 + $0x8] sm:$0xff]
      %v198 = vld [vmem:[%s3 + $0x10] sm:$0xff]
      %v199 = vld [vmem:[%s3 + $0x18] sm:$0xff]
      %v200 = vld [vmem:[%s4] sm:$0x1]
      %v202 = vlaneseq
      %v203 = vshrl.u32 %v202, 7
      %v204 = vsub.s32 0, %v203
      %v205 = vrot.slane %v195, %v204
      %v215 = vlaneseq
      %v216 = vand.u32 %v215, 127
      %v217 = vlaneseq
      %v218 = vshrl.u32 %v217, 7
      %v219 = vsub.s32 %v216, %v218
      %v220 = vrot.slane %v162, %v219
      %v221 = vadd.s32 %v216, 4294967288
      %v222 = vlaneseq
      %v223 = vshrl.u32 %v222, 7
      %v224 = vsub.s32 %v221, %v223
      %v225 = vrot.slane %v163, %v224
      %vm226 = vcmask 130112
      %v227 = vsel %vm226, %v225, %v220
      %v228 = vadd.s32 %v216, 4294967280
      %v229 = vlaneseq
      %v230 = vshrl.u32 %v229, 7
      %v231 = vsub.s32 %v228, %v230
      %v232 = vrot.slane %v164, %v231
      %vm233 = vcmask 195712
      %v234 = vsel %vm233, %v232, %v227
      %v235 = vadd.s32 %v216, 4294967272
      %v236 = vlaneseq
      %v237 = vshrl.u32 %v236, 7
      %v238 = vsub.s32 %v235, %v237
      %v239 = vrot.slane %v165, %v238
      %vm240 = vcmask 261312
      %v241 = vsel %vm240, %v239, %v234
      %v242 = vlaneseq
      %v243 = vshrl.u32 %v242, 7
      %v244 = vsub.s32 %v216, %v243
      %v245 = vrot.slane %v166, %v244
      %v246 = vlaneseq
      %v247 = vshrl.u32 %v246, 7
      %v248 = vsub.s32 %v221, %v247
      %v249 = vrot.slane %v167, %v248
      %v250 = vsel %vm226, %v249, %v245
      %v251 = vlaneseq
      %v252 = vshrl.u32 %v251, 7
      %v253 = vsub.s32 %v228, %v252
      %v254 = vrot.slane %v168, %v253
      %v255 = vsel %vm233, %v254, %v250
      %v256 = vlaneseq
      %v257 = vshrl.u32 %v256, 7
      %v258 = vsub.s32 %v235, %v257
      %v259 = vrot.slane %v169, %v258
      %v260 = vsel %vm240, %v259, %v255
      %vm261 = vcmask 1041409
      %v262 = vsel %vm261, %v260, %v241
      %vm263 = vcmask 261120
      %v264 = vsel %vm263, %v262, 0
      %v267 = vsel %vm263, %v194, 0
      %269 = vmatprep.subr.mxu0 0.0
      %270 = vmatpush1.xpose.msra.mxu0 %v267
      %271 = vmatprep.subr.mxu0 0.0
      %272 = vmatpush1.xpose.msra.mxu0 0.0
      %273 = vmatprep.subr.mxu0 0.0
      %274 = vmatpush1.xpose.msra.mxu0 0.0
      %275 = vmatprep.subr.mxu0 0.0
      %276 = vmatpush1.xpose.msra.mxu0 0.0
      %277 = vmatprep.subr.mxu0 0.0
      %278 = vmatpush1.xpose.msra.mxu0 0.0
      %279 = vmatprep.subr.mxu0 0.0
      %280 = vmatpush1.xpose.msra.mxu0 0.0
      %281 = vmatprep.subr.mxu0 0.0
      %282 = vmatpush1.xpose.msra.mxu0 0.0
      %283 = vmatprep.subr.mxu0 0.0
      %284 = vmatpush1.xpose.msra.mxu0 0.0
      %285 = vmatprep.subr.mxu0 0.0
      %286 = vmatpush1.xpose.msra.mxu0 0.0
      %287 = vmatprep.subr.mxu0 0.0
      %288 = vmatpush1.xpose.msra.mxu0 0.0
      %289 = vmatprep.subr.mxu0 0.0
      %290 = vmatpush1.xpose.msra.mxu0 0.0
      %291 = vmatprep.subr.mxu0 0.0
      %292 = vmatpush1.xpose.msra.mxu0 0.0
      %293 = vmatprep.subr.mxu0 0.0
      %294 = vmatpush1.xpose.msra.mxu0 0.0
      %295 = vmatprep.subr.mxu0 0.0
      %296 = vmatpush1.xpose.msra.mxu0 0.0
      %297 = vmatprep.subr.mxu0 0.0
      %298 = vmatpush1.xpose.msra.mxu0 0.0
      %299 = vmatprep.subr.mxu0 0.0
      %300 = vmatpush1.xpose.msra.mxu0 0.0
      %301 = vmatprep.subr.mxu0 0.0
      %302 = vmatpush1.xpose.msra.mxu0 0.0
      %303 = vmatprep.subr.mxu0 0.0
      %304 = vmatpush1.xpose.msra.mxu0 0.0
      %305 = vmatprep.subr.mxu0 0.0
      %306 = vmatpush1.xpose.msra.mxu0 0.0
      %307 = vmatprep.subr.mxu0 0.0
      %308 = vmatpush1.xpose.msra.mxu0 0.0
      %309 = vmatprep.subr.mxu0 0.0
      %310 = vmatpush1.xpose.msra.mxu0 0.0
      %311 = vmatprep.subr.mxu0 0.0
      %312 = vmatpush1.xpose.msra.mxu0 0.0
      %313 = vmatprep.subr.mxu0 0.0
      %314 = vmatpush1.xpose.msra.mxu0 0.0
      %315 = vmatprep.subr.mxu0 0.0
      %316 = vmatpush1.xpose.msra.mxu0 0.0
      %317 = vmatprep.subr.mxu0 0.0
      %318 = vmatpush1.xpose.msra.mxu0 0.0
      %319 = vmatprep.subr.mxu0 0.0
      %320 = vmatpush1.xpose.msra.mxu0 0.0
      %321 = vmatprep.subr.mxu0 0.0
      %322 = vmatpush1.xpose.msra.mxu0 0.0
      %323 = vmatprep.subr.mxu0 0.0
      %324 = vmatpush1.xpose.msra.mxu0 0.0
      %325 = vmatprep.subr.mxu0 0.0
      %326 = vmatpush1.xpose.msra.mxu0 0.0
      %327 = vmatprep.subr.mxu0 0.0
      %328 = vmatpush1.xpose.msra.mxu0 0.0
      %329 = vmatprep.subr.mxu0 0.0
      %330 = vmatpush1.xpose.msra.mxu0 0.0
      %331 = vmatprep.subr.mxu0 0.0
      %332 = vmatpush1.xpose.msra.mxu0 0.0
      %333 = vmatprep.mubr.f32.mxu0 0.0
      %334 = vmatmul.mubr.f32.gmra.mrb[0].mxu0 %v264
      %v335 = vpop.f32.mrb[0].mxu0
      %v336 = vadd.f32 %v205, %v335
      %v337 = vpop.f32.mrb[0].mxu0
      %338 = vdwg.mxu0
      %v339 = vmax.f32 %v336, 0.0
      %v341 = vlaneseq
      %v342 = vshrl.u32 %v341, 7
      %v343 = vsub.s32 0, %v342
      %v344 = vrot.slane %v200, %v343
      %vm346 = vcmask 15360
      %v348 = vsel %vm346, %v339, 0
      %v351 = vsel %vm346, %v196, 0
      %v354 = vsel %vm346, %v197, 0
      %v357 = vsel %vm346, %v198, 0
      %v360 = vsel %vm346, %v199, 0
      %362 = vmatprep.subr.mxu0 0.0
      %363 = vmatpush1.xpose.msra.mxu0 %v351
      %364 = vmatprep.subr.mxu0 0.0
      %365 = vmatpush1.xpose.msra.mxu0 %v354
      %366 = vmatprep.subr.mxu0 0.0
      %367 = vmatpush1.xpose.msra.mxu0 %v357
      %368 = vmatprep.subr.mxu0 0.0
      %369 = vmatpush1.xpose.msra.mxu0 %v360
      %370 = vmatprep.subr.mxu0 0.0
      %371 = vmatpush1.xpose.msra.mxu0 0.0
      %372 = vmatprep.subr.mxu0 0.0
      %373 = vmatpush1.xpose.msra.mxu0 0.0
      %374 = vmatprep.subr.mxu0 0.0
      %375 = vmatpush1.xpose.msra.mxu0 0.0
      %376 = vmatprep.subr.mxu0 0.0
      %377 = vmatpush1.xpose.msra.mxu0 0.0
      %378 = vmatprep.subr.mxu0 0.0
      %379 = vmatpush1.xpose.msra.mxu0 0.0
      %380 = vmatprep.subr.mxu0 0.0
      %381 = vmatpush1.xpose.msra.mxu0 0.0
      %382 = vmatprep.subr.mxu0 0.0
      %383 = vmatpush1.xpose.msra.mxu0 0.0
      %384 = vmatprep.subr.mxu0 0.0
      %385 = vmatpush1.xpose.msra.mxu0 0.0
      %386 = vmatprep.subr.mxu0 0.0
      %387 = vmatpush1.xpose.msra.mxu0 0.0
      %388 = vmatprep.subr.mxu0 0.0
      %389 = vmatpush1.xpose.msra.mxu0 0.0
      %390 = vmatprep.subr.mxu0 0.0
      %391 = vmatpush1.xpose.msra.mxu0 0.0
      %392 = vmatprep.subr.mxu0 0.0
      %393 = vmatpush1.xpose.msra.mxu0 0.0
      %394 = vmatprep.subr.mxu0 0.0
      %395 = vmatpush1.xpose.msra.mxu0 0.0
      %396 = vmatprep.subr.mxu0 0.0
      %397 = vmatpush1.xpose.msra.mxu0 0.0
      %398 = vmatprep.subr.mxu0 0.0
      %399 = vmatpush1.xpose.msra.mxu0 0.0
      %400 = vmatprep.subr.mxu0 0.0
      %401 = vmatpush1.xpose.msra.mxu0 0.0
      %402 = vmatprep.subr.mxu0 0.0
      %403 = vmatpush1.xpose.msra.mxu0 0.0
      %404 = vmatprep.subr.mxu0 0.0
      %405 = vmatpush1.xpose.msra.mxu0 0.0
      %406 = vmatprep.subr.mxu0 0.0
      %407 = vmatpush1.xpose.msra.mxu0 0.0
      %408 = vmatprep.subr.mxu0 0.0
      %409 = vmatpush1.xpose.msra.mxu0 0.0
      %410 = vmatprep.subr.mxu0 0.0
      %411 = vmatpush1.xpose.msra.mxu0 0.0
      %412 = vmatprep.subr.mxu0 0.0
      %413 = vmatpush1.xpose.msra.mxu0 0.0
      %414 = vmatprep.subr.mxu0 0.0
      %415 = vmatpush1.xpose.msra.mxu0 0.0
      %416 = vmatprep.subr.mxu0 0.0
      %417 = vmatpush1.xpose.msra.mxu0 0.0
      %418 = vmatprep.subr.mxu0 0.0
      %419 = vmatpush1.xpose.msra.mxu0 0.0
      %420 = vmatprep.subr.mxu0 0.0
      %421 = vmatpush1.xpose.msra.mxu0 0.0
      %422 = vmatprep.subr.mxu0 0.0
      %423 = vmatpush1.xpose.msra.mxu0 0.0
      %424 = vmatprep.subr.mxu0 0.0
      %425 = vmatpush1.xpose.msra.mxu0 0.0
      %426 = vmatprep.mubr.f32.mxu0 0.0
      %427 = vmatmul.mubr.f32.gmra.mrb[0].mxu0 %v348
      %v428 = vpop.f32.mrb[0].mxu0
      %v429 = vadd.f32 %v344, %v428
      %v430 = vpop.f32.mrb[0].mxu0
      %431 = vdwg.mxu0
      %v440 = vlaneseq
      %v441 = vshrl.u32 %v440, 7
      %v442 = vsub.s32 %v216, %v441
      %v443 = vrot.slane %v179, %v442
      %v444 = vlaneseq
      %v445 = vshrl.u32 %v444, 7
      %v446 = vsub.s32 %v221, %v445
      %v447 = vrot.slane %v181, %v446
      %v448 = vsel %vm226, %v447, %v443
      %v449 = vlaneseq
      %v450 = vshrl.u32 %v449, 7
      %v451 = vsub.s32 %v228, %v450
      %v452 = vrot.slane %v183, %v451
      %v453 = vsel %vm233, %v452, %v448
      %v454 = vlaneseq
      %v455 = vshrl.u32 %v454, 7
      %v456 = vsub.s32 %v235, %v455
      %v457 = vrot.slane %v185, %v456
      %v458 = vsel %vm240, %v457, %v453
      %v459 = vlaneseq
      %v460 = vshrl.u32 %v459, 7
      %v461 = vsub.s32 %v216, %v460
      %v462 = vrot.slane %v187, %v461
      %v463 = vlaneseq
      %v464 = vshrl.u32 %v463, 7
      %v465 = vsub.s32 %v221, %v464
      %v466 = vrot.slane %v189, %v465
      %v467 = vsel %vm226, %v466, %v462
      %v468 = vlaneseq
      %v469 = vshrl.u32 %v468, 7
      %v470 = vsub.s32 %v228, %v469
      %v471 = vrot.slane %v191, %v470
      %v472 = vsel %vm233, %v471, %v467
      %v473 = vlaneseq
      %v474 = vshrl.u32 %v473, 7
      %v475 = vsub.s32 %v235, %v474
      %v476 = vrot.slane %v193, %v475
      %v477 = vsel %vm240, %v476, %v472
      %v478 = vsel %vm261, %v477, %v458
      %v479 = vsel %vm263, %v478, 0
      %481 = vmatprep.subr.mxu0 0.0
      %482 = vmatpush1.xpose.msra.mxu0 %v267
      %483 = vmatprep.subr.mxu0 0.0
      %484 = vmatpush1.xpose.msra.mxu0 0.0
      %485 = vmatprep.subr.mxu0 0.0
      %486 = vmatpush1.xpose.msra.mxu0 0.0
      %487 = vmatprep.subr.mxu0 0.0
      %488 = vmatpush1.xpose.msra.mxu0 0.0
      %489 = vmatprep.subr.mxu0 0.0
      %490 = vmatpush1.xpose.msra.mxu0 0.0
      %491 = vmatprep.subr.mxu0 0.0
      %492 = vmatpush1.xpose.msra.mxu0 0.0
      %493 = vmatprep.subr.mxu0 0.0
      %494 = vmatpush1.xpose.msra.mxu0 0.0
      %495 = vmatprep.subr.mxu0 0.0
      %496 = vmatpush1.xpose.msra.mxu0 0.0
      %497 = vmatprep.subr.mxu0 0.0
      %498 = vmatpush1.xpose.msra.mxu0 0.0
      %499 = vmatprep.subr.mxu0 0.0
      %500 = vmatpush1.xpose.msra.mxu0 0.0
      %501 = vmatprep.subr.mxu0 0.0
      %502 = vmatpush1.xpose.msra.mxu0 0.0
      %503 = vmatprep.subr.mxu0 0.0
      %504 = vmatpush1.xpose.msra.mxu0 0.0
      %505 = vmatprep.subr.mxu0 0.0
      %506 = vmatpush1.xpose.msra.mxu0 0.0
      %507 = vmatprep.subr.mxu0 0.0
      %508 = vmatpush1.xpose.msra.mxu0 0.0
      %509 = vmatprep.subr.mxu0 0.0
      %510 = vmatpush1.xpose.msra.mxu0 0.0
      %511 = vmatprep.subr.mxu0 0.0
      %512 = vmatpush1.xpose.msra.mxu0 0.0
      %513 = vmatprep.subr.mxu0 0.0
      %514 = vmatpush1.xpose.msra.mxu0 0.0
      %515 = vmatprep.subr.mxu0 0.0
      %516 = vmatpush1.xpose.msra.mxu0 0.0
      %517 = vmatprep.subr.mxu0 0.0
      %518 = vmatpush1.xpose.msra.mxu0 0.0
      %519 = vmatprep.subr.mxu0 0.0
      %520 = vmatpush1.xpose.msra.mxu0 0.0
      %521 = vmatprep.subr.mxu0 0.0
      %522 = vmatpush1.xpose.msra.mxu0 0.0
      %523 = vmatprep.subr.mxu0 0.0
      %524 = vmatpush1.xpose.msra.mxu0 0.0
      %525 = vmatprep.subr.mxu0 0.0
      %526 = vmatpush1.xpose.msra.mxu0 0.0
      %527 = vmatprep.subr.mxu0 0.0
      %528 = vmatpush1.xpose.msra.mxu0 0.0
      %529 = vmatprep.subr.mxu0 0.0
      %530 = vmatpush1.xpose.msra.mxu0 0.0
      %531 = vmatprep.subr.mxu0 0.0
      %532 = vmatpush1.xpose.msra.mxu0 0.0
      %533 = vmatprep.subr.mxu0 0.0
      %534 = vmatpush1.xpose.msra.mxu0 0.0
      %535 = vmatprep.subr.mxu0 0.0
      %536 = vmatpush1.xpose.msra.mxu0 0.0
      %537 = vmatprep.subr.mxu0 0.0
      %538 = vmatpush1.xpose.msra.mxu0 0.0
      %539 = vmatprep.subr.mxu0 0.0
      %540 = vmatpush1.xpose.msra.mxu0 0.0
      %541 = vmatprep.subr.mxu0 0.0
      %542 = vmatpush1.xpose.msra.mxu0 0.0
      %543 = vmatprep.subr.mxu0 0.0
      %544 = vmatpush1.xpose.msra.mxu0 0.0
      %545 = vmatprep.mubr.f32.mxu0 0.0
      %546 = vmatmul.mubr.f32.gmra.mrb[0].mxu0 %v479
      %v547 = vpop.f32.mrb[0].mxu0
      %v548 = vadd.f32 %v205, %v547
      %v549 = vpop.f32.mrb[0].mxu0
      %550 = vdwg.mxu0
      %v551 = vmax.f32 %v548, 0.0
      %v553 = vsel %vm346, %v551, 0
      %555 = vmatprep.subr.mxu0 0.0
      %556 = vmatpush1.xpose.msra.mxu0 %v351
      %557 = vmatprep.subr.mxu0 0.0
      %558 = vmatpush1.xpose.msra.mxu0 %v354
      %559 = vmatprep.subr.mxu0 0.0
      %560 = vmatpush1.xpose.msra.mxu0 %v357
      %561 = vmatprep.subr.mxu0 0.0
      %562 = vmatpush1.xpose.msra.mxu0 %v360
      %563 = vmatprep.subr.mxu0 0.0
      %564 = vmatpush1.xpose.msra.mxu0 0.0
      %565 = vmatprep.subr.mxu0 0.0
      %566 = vmatpush1.xpose.msra.mxu0 0.0
      %567 = vmatprep.subr.mxu0 0.0
      %568 = vmatpush1.xpose.msra.mxu0 0.0
      %569 = vmatprep.subr.mxu0 0.0
      %570 = vmatpush1.xpose.msra.mxu0 0.0
      %571 = vmatprep.subr.mxu0 0.0
      %572 = vmatpush1.xpose.msra.mxu0 0.0
      %573 = vmatprep.subr.mxu0 0.0
      %574 = vmatpush1.xpose.msra.mxu0 0.0
      %575 = vmatprep.subr.mxu0 0.0
      %576 = vmatpush1.xpose.msra.mxu0 0.0
      %577 = vmatprep.subr.mxu0 0.0
      %578 = vmatpush1.xpose.msra.mxu0 0.0
      %579 = vmatprep.subr.mxu0 0.0
      %580 = vmatpush1.xpose.msra.mxu0 0.0
      %581 = vmatprep.subr.mxu0 0.0
      %582 = vmatpush1.xpose.msra.mxu0 0.0
      %583 = vmatprep.subr.mxu0 0.0
      %584 = vmatpush1.xpose.msra.mxu0 0.0
      %585 = vmatprep.subr.mxu0 0.0
      %586 = vmatpush1.xpose.msra.mxu0 0.0
      %587 = vmatprep.subr.mxu0 0.0
      %588 = vmatpush1.xpose.msra.mxu0 0.0
      %589 = vmatprep.subr.mxu0 0.0
      %590 = vmatpush1.xpose.msra.mxu0 0.0
      %591 = vmatprep.subr.mxu0 0.0
      %592 = vmatpush1.xpose.msra.mxu0 0.0
      %593 = vmatprep.subr.mxu0 0.0
      %594 = vmatpush1.xpose.msra.mxu0 0.0
      %595 = vmatprep.subr.mxu0 0.0
      %596 = vmatpush1.xpose.msra.mxu0 0.0
      %597 = vmatprep.subr.mxu0 0.0
      %598 = vmatpush1.xpose.msra.mxu0 0.0
      %599 = vmatprep.subr.mxu0 0.0
      %600 = vmatpush1.xpose.msra.mxu0 0.0
      %601 = vmatprep.subr.mxu0 0.0
      %602 = vmatpush1.xpose.msra.mxu0 0.0
      %603 = vmatprep.subr.mxu0 0.0
      %604 = vmatpush1.xpose.msra.mxu0 0.0
      %605 = vmatprep.subr.mxu0 0.0
      %606 = vmatpush1.xpose.msra.mxu0 0.0
      %607 = vmatprep.subr.mxu0 0.0
      %608 = vmatpush1.xpose.msra.mxu0 0.0
      %609 = vmatprep.subr.mxu0 0.0
      %610 = vmatpush1.xpose.msra.mxu0 0.0
      %611 = vmatprep.subr.mxu0 0.0
      %612 = vmatpush1.xpose.msra.mxu0 0.0
      %613 = vmatprep.subr.mxu0 0.0
      %614 = vmatpush1.xpose.msra.mxu0 0.0
      %615 = vmatprep.subr.mxu0 0.0
      %616 = vmatpush1.xpose.msra.mxu0 0.0
      %617 = vmatprep.subr.mxu0 0.0
      %618 = vmatpush1.xpose.msra.mxu0 0.0
      %619 = vmatprep.mubr.f32.mxu0 0.0
      %620 = vmatmul.mubr.f32.gmra.mrb[0].mxu0 %v553
      %v621 = vpop.f32.mrb[0].mxu0
      %v622 = vadd.f32 %v344, %v621
      %v623 = vpop.f32.mrb[0].mxu0
      %624 = vdwg.mxu0
      %v625 = vadd.f32 %v429, %v622
      %v626 = vsub.f32 0.0, %v625
      %v627 = vmul.f32 %v626, 1.442695
      %v628 = vpow.pop %v627
      %v629 = vadd.f32 %v628, 1.0
      %v630 = vrcp.pop %v629
      %v631 = vmul.f32 1.0, %v630
      %v634 = vunpack.c.l.s4 1966171168
      %v635 = vunpack.c.0.s8 %v634
      %v636 = vlaneseq
      %v637 = vshrl.u32 %v636, 7
      %v638 = vsub.s32 %v635, %v637
      %v639 = vrot.slane %v631, %v638
      %v640 = vcombine.high %v639, %v639
      %v642 = vunpack.c.l.s4 1966171168
      %v643 = vunpack.c.0.s8 %v642
      %v644 = vlaneseq
      %v645 = vshrl.u32 %v644, 7
      %v646 = vsub.s32 %v643, %v645
      %v647 = vrot.slane %v639, %v646
      %v649 = vunpack.c.l.s4 1966171168
      %v650 = vunpack.c.0.s8 %v649
      %v651 = vlaneseq
      %v652 = vshrl.u32 %v651, 7
      %v653 = vsub.s32 %v650, %v652
      %v654 = vrot.slane %v640, %v653
      %vm657 = vcmask 253952
      %658 = vst.msk [vmem:[#allocation7] sm:$0x1] %vm657, %v647
      %659 = vst.msk [vmem:[#allocation7 + $0x1] sm:$0x1] %vm657, %v654
    $region33: #{tpu_custom_call.1} parent=1 // pred_fallthru
      _
    // Predicated region
    $region34: #{tpu_custom_call.1} parent=1 // pred_check
      _
    $region35: #{tpu_custom_call.1} parent=1 // pred_check_branch
      %661 = sbr.rel (0) target = $region37
    $region36: #{tpu_custom_call.1} parent=1 // pred_region
      %s663 = ssub.s32 32, 32
      %664 = vsyncadd [#allocation6], %s663
      %s665 = sshll.u32 [#allocation7], 4
      %s666 = int_to_ptr.vmem [resolvable:$true] %s665
      %671 = dma.vmem_to_hbm [thread:$0]  %s666, 32, %s5, [#allocation6], 16, 16, 1
    $region37: #{tpu_custom_call.1} parent=1 // pred_fallthru
      _
    // Predicated region
    $region38: #{tpu_custom_call.1} parent=1 // pred_check
      _
    $region39: #{tpu_custom_call.1} parent=1 // pred_check_branch
      %673 = sbr.rel (0) target = $region41
    $region40: #{tpu_custom_call.1} parent=1 // pred_region
      %674 = dma.done [#allocation6], 32
    $region41: #{tpu_custom_call.1} parent=1 // pred_fallthru
      _
    %675 = vsyncpa [#allocation5], 1
    %676 = vsyncpa [#allocation6], 1

</llo_original>
